<compile_context>
chip_gen: v6e
topology: v6e:2x2x1
jax: 0.10.0
libtpu: 0.0.40
codegen_flags: <defaults>
</compile_context>

<pallas_src>
import functools

import jax
import jax.numpy as jnp
from jax.experimental import pallas as pl
from jax.experimental.pallas import tpu as pltpu


def _round_up(x, m):
    return ((x + m - 1) // m) * m


def _device_kind():
    try:
        return jax.devices()[0].device_kind.lower()
    except Exception:
        return ""


def _default_num_splits():
    # Only v7x exposes 2 TensorCores per chip; on v5e/v6e a second split is just a
    # serial loop with an extra (clamped, fully masked) redundant step.
    return 2 if "v7" in _device_kind() else 1


def _vmem_cap_bytes():
    # v7x: 64 MiB VMEM per TensorCore -> leave headroom; v5e/v6e: 128 MiB physical.
    return (48 << 20) if "v7" in _device_kind() else (100 << 20)


def _ce_ignore0_kernel(labels_ref, logits_ref, partial_ref, nll_acc, cnt_acc, *,
                       n_rows, tile_n, steps_per_split):
    # labels_ref : (tile_n, 1) int32   VMEM
    # logits_ref : (tile_n, C) native  VMEM
    # partial_ref: (1, 2)      f32     SMEM output block, resident across inner axis
    # nll_acc    : (tile_n, 1) f32     VMEM scratch (per-row nll accumulator)
    # cnt_acc    : (tile_n, 1) f32     VMEM scratch (per-row valid-count accumulator)
    c = pl.program_id(0)   # split (TensorCore on v7x)
    i = pl.program_id(1)   # step within this split ("arbitrary" reduction axis)

    @pl.when(i == 0)
    def _():
        nll_acc[...] = jnp.zeros_like(nll_acc)
        cnt_acc[...] = jnp.zeros_like(cnt_acc)

    x = logits_ref[...]                                     # (tile_n, C) native dtype
    labels = labels_ref[...]                                # (tile_n, 1) int32

    # Row max in native dtype (exact: pure selection), then one fused cast+shift pass.
    m = jnp.max(x, axis=-1, keepdims=True).astype(jnp.float32)     # (tile_n, 1)
    shifted = x.astype(jnp.float32) - m                            # (tile_n, C) f32
    sumexp = jnp.sum(jnp.exp(shifted), axis=-1, keepdims=True)     # (tile_n, 1)

    # Target gather reuses `shifted` (no dynamic lane gather, no second pass on x):
    #   nll = log(sum exp(x - m)) - (x_t - m)
    col_ids = jax.lax.broadcasted_iota(jnp.int32, shifted.shape, 1)
    tgt_shifted = jnp.sum(jnp.where(col_ids == labels, shifted, 0.0),
                          axis=-1, keepdims=True)

    # Valid = (label != ignore_index 0) AND (row exists in the original N).
    # NOTE: labels outside [0, C) other than 0 yield tgt=0 and still count as valid
    # (torch would raise); callers must pass in-range labels.
    row_ids = (c * steps_per_split + i) * tile_n + jax.lax.broadcasted_iota(
        jnp.int32, labels.shape, 0)
    valid = jnp.logical_and(labels != 0, row_ids < n_rows)

    # Select (not multiply): padded/garbage rows contribute exactly 0 even if NaN/Inf.
    nll = jnp.where(valid, jnp.log(sumexp) - tgt_shifted, 0.0)     # (tile_n, 1)

    nll_acc[...] += nll
    cnt_acc[...] += valid.astype(jnp.float32)

    # Cross-lane reduce + SMEM store once per split (no per-step SMEM RMW chain).
    @pl.when(i == steps_per_split - 1)
    def _():
        partial_ref[0, 0] = jnp.sum(nll_acc[...])
        partial_ref[0, 1] = jnp.sum(cnt_acc[...])


def pren_loss(predicts, labels, *, tile_n=None, num_splits=None,
              target_block_bytes=2 * 1024 * 1024):
    """predicts: [N, C] logits (any float dtype); labels: [N] int class ids (0 = ignore).

    Matches torch.nn.CrossEntropyLoss(ignore_index=0, reduction='mean').
    """
    N, C = predicts.shape
    labels2d = labels.astype(jnp.int32).reshape(N, 1)
    itemsize = jnp.dtype(predicts.dtype).itemsize

    if num_splits is None:
        num_splits = _default_num_splits()

    if tile_n is None:
        # Byte-budgeted row tile (~target_block_bytes of logits per block) to amortize
        # the ~0.35us per-grid-step overhead; measured mem-bound knee is ~1-4 MiB.
        tile_n = max(8, (target_block_bytes // (C * itemsize)) // 8 * 8)
    # Keep the row tile a multiple of 8 sublanes and no bigger than (rounded) N.
    tile_n = int(max(8, min(_round_up(tile_n, 8), _round_up(N, 8))))

    n_blocks = pl.cdiv(N, tile_n)
    num_splits = int(max(1, min(num_splits, n_blocks)))
    steps_per_split = pl.cdiv(n_blocks, num_splits)

    def row_block_map(c, i):
        # Clamp so out-of-range steps re-read the last block (their rows are masked
        # out in-kernel via row_ids >= N) instead of issuing an OOB DMA.
        return (jnp.minimum(c * steps_per_split + i, n_blocks - 1), 0)

    kernel = functools.partial(
        _ce_ignore0_kernel,
        n_rows=N, tile_n=tile_n, steps_per_split=steps_per_split)

    # VMEM budget: double-buffered input blocks + f32 temporaries (shifted/exp) + scratch,
    # with headroom, capped generation-aware (48 MiB on v7x, ~100 MiB on v5e/v6e).
    logits_block_bytes = tile_n * C * itemsize
    labels_block_bytes = tile_n * 4
    f32_tmp_bytes = 3 * tile_n * C * 4
    scratch_bytes = 2 * tile_n * 4
    needed = 2 * (logits_block_bytes + labels_block_bytes) + f32_tmp_bytes + scratch_bytes
    vmem_limit = int(min(max(needed + (4 << 20), 32 << 20), _vmem_cap_bytes()))

    cost = pl.CostEstimate(
        flops=int(6 * N * C),
        transcendentals=int(N * C + N),
        bytes_accessed=int(N * C * itemsize + N * 4 + num_splits * 2 * 4))

    partials = pl.pallas_call(
        kernel,
        out_shape=jax.ShapeDtypeStruct((num_splits, 2), jnp.float32),
        grid=(num_splits, steps_per_split),
        in_specs=[
            pl.BlockSpec((tile_n, 1), row_block_map),   # labels tile
            pl.BlockSpec((tile_n, C), row_block_map),   # logits tile (native dtype)
        ],
        out_specs=pl.BlockSpec((1, 2), lambda c, i: (c, 0),
                               memory_space=pltpu.MemorySpace.SMEM),
        scratch_shapes=[
            pltpu.VMEM((tile_n, 1), jnp.float32),       # per-row nll accumulator
            pltpu.VMEM((tile_n, 1), jnp.float32),       # per-row valid-count accumulator
        ],
        compiler_params=pltpu.CompilerParams(
            dimension_semantics=("parallel", "arbitrary"),
            vmem_limit_bytes=vmem_limit,
        ),
        cost_estimate=cost,
    )(labels2d, predicts)

    # Combine per-split partials once; 0/0 -> NaN if every label is ignored (torch parity).
    loss = jnp.sum(partials[:, 0]) / jnp.sum(partials[:, 1])
    return {"loss": loss}


def _reference_loss(predicts, labels):
    # Pure-JAX reference of torch.nn.CrossEntropyLoss(ignore_index=0, reduction='mean').
    logp = jax.nn.log_softmax(predicts.astype(jnp.float32), axis=-1)
    nll = -jnp.take_along_axis(logp, labels.astype(jnp.int32)[:, None], axis=-1)[:, 0]
    valid = (labels != 0).astype(jnp.float32)
    return jnp.sum(nll * valid) / jnp.sum(valid)


if __name__ == "__main__":
    key = jax.random.PRNGKey(0)
    k1, k2, k3, k4 = jax.random.split(key, 4)

    batch, seq, num_classes = 2, 8, 32
    N = batch * seq

    # predicts: flattened [batch*seq, num_classes] logits (what the PREN head emits)
    predicts = jax.random.normal(k1, (N, num_classes), dtype=jnp.float32)
    # labels: batch[1] in the torch module; include 0s (padding -> ignored)
    labels = jax.random.randint(k2, (N,), 0, num_classes, dtype=jnp.int32)

    # f32 path (auto tile / split selection)
    out = pren_loss(predicts, labels)
    loss = jax.block_until_ready(out["loss"])
    ref = _reference_loss(predicts, labels)
    assert jnp.allclose(loss, ref, atol=1e-5, rtol=1e-5), (loss, ref)

    # bf16 path: stream bf16 from HBM, fused cast inside the kernel
    predicts_bf16 = predicts.astype(jnp.bfloat16)
    out_bf16 = pren_loss(predicts_bf16, labels)
    loss_bf16 = jax.block_until_ready(out_bf16["loss"])
    ref_bf16 = _reference_loss(predicts_bf16, labels)
    assert jnp.allclose(loss_bf16, ref_bf16, atol=1e-5, rtol=1e-5), (loss_bf16, ref_bf16)

    # Ragged tail: N not a multiple of the row tile, plus a forced 2nd split that hits
    # the clamped (fully masked) redundant step.
    N2 = 20
    predicts2 = jax.random.normal(k3, (N2, num_classes), dtype=jnp.float32)
    labels2 = jax.random.randint(k4, (N2,), 0, num_classes, dtype=jnp.int32)
    out2 = pren_loss(predicts2, labels2, tile_n=8, num_splits=2)
    loss2 = jax.block_until_ready(out2["loss"])
    ref2 = _reference_loss(predicts2, labels2)
    assert jnp.allclose(loss2, ref2, atol=1e-5, rtol=1e-5), (loss2, ref2)

    print("KERNEL_OK")
</pallas_src>

<mosaic_0001>
module attributes {stable_mosaic.version = 11 : i64} {
  func.func @_ce_ignore0_kernel(%arg0: i32, %arg1: i32, %arg2: memref<16x1xi32, #tpu.memory_space<vmem>>, %arg3: memref<16x32xf32, #tpu.memory_space<vmem>>, %arg4: memref<1x2xf32, #tpu.memory_space<smem>>, %arg5: memref<16x1xf32, #tpu.memory_space<vmem>>, %arg6: memref<16x1xf32, #tpu.memory_space<vmem>>) attributes {dimension_semantics = [#tpu.dimension_semantics<parallel>, #tpu.dimension_semantics<arbitrary>], iteration_bounds = array<i64: 1, 1>, scalar_prefetch = 0 : i64, scratch_operands = 2 : i64, tpu.core_type = #tpu.core_type<tc>, window_params = [{transform_indices = @transform_0, window_bounds = array<i64: 16, 1>}, {transform_indices = @transform_1, window_bounds = array<i64: 16, 32>}, {transform_indices = @transform_2, window_bounds = array<i64: 1, 2>}]} {
    %c0_i32 = arith.constant 0 : i32
    %0 = arith.cmpi eq, %arg1, %c0_i32 : i32
    %1 = arith.extui %0 : i1 to i32
    %c0_i32_0 = arith.constant 0 : i32
    %2 = arith.cmpi ne, %1, %c0_i32_0 : i32
    scf.if %2 {
      %cst_20 = arith.constant 0.000000e+00 : f32
      %45 = vector.broadcast %cst_20 : f32 to vector<16x1xf32>
      %c0_21 = arith.constant 0 : index
      %c0_22 = arith.constant 0 : index
      %46 = vector.load %arg5[%c0_21, %c0_22] : memref<16x1xf32, #tpu.memory_space<vmem>>, vector<16x1xf32>
      tpu.vector_store %arg5[%c0_21, %c0_22], %45 {strides = array<i32>} : memref<16x1xf32, #tpu.memory_space<vmem>>, vector<16x1xf32>,
      %cst_23 = arith.constant 0.000000e+00 : f32
      %47 = vector.broadcast %cst_23 : f32 to vector<16x1xf32>
      %c0_24 = arith.constant 0 : index
      %c0_25 = arith.constant 0 : index
      %48 = vector.load %arg6[%c0_24, %c0_25] : memref<16x1xf32, #tpu.memory_space<vmem>>, vector<16x1xf32>
      tpu.vector_store %arg6[%c0_24, %c0_25], %47 {strides = array<i32>} : memref<16x1xf32, #tpu.memory_space<vmem>>, vector<16x1xf32>,
    } else {
    }
    %c0 = arith.constant 0 : index
    %c0_1 = arith.constant 0 : index
    %3 = vector.load %arg3[%c0, %c0_1] : memref<16x32xf32, #tpu.memory_space<vmem>>, vector<16x32xf32>
    %c0_2 = arith.constant 0 : index
    %c0_3 = arith.constant 0 : index
    %4 = vector.load %arg2[%c0_2, %c0_3] : memref<16x1xi32, #tpu.memory_space<vmem>>, vector<16x1xi32>
    %cst = arith.constant dense<0xFF800000> : vector<16xf32>
    %5 = vector.multi_reduction <maximumf>, %3, %cst [1] : vector<16x32xf32> to vector<16xf32>
    %6 = vector.shape_cast %5 : vector<16xf32> to vector<16x1xf32>
    %7 = vector.broadcast %6 : vector<16x1xf32> to vector<16x32xf32>
    %8 = arith.subf %3, %7 : vector<16x32xf32>
    %9 = math.exp %8 : vector<16x32xf32>
    %cst_4 = arith.constant dense<0.000000e+00> : vector<16xf32>
    %10 = vector.multi_reduction <add>, %9, %cst_4 [1] : vector<16x32xf32> to vector<16xf32>
    %11 = vector.shape_cast %10 : vector<16xf32> to vector<16x1xf32>
    %12 = tpu.iota {dimensions = array<i32: 1>} : vector<16x32xi32>
    %13 = vector.broadcast %4 : vector<16x1xi32> to vector<16x32xi32>
    %14 = arith.cmpi eq, %12, %13 : vector<16x32xi32>
    %cst_5 = arith.constant 0.000000e+00 : f32
    %15 = vector.broadcast %cst_5 : f32 to vector<16x32xf32>
    %16 = arith.select %14, %8, %15 : vector<16x32xi1>, vector<16x32xf32>
    %cst_6 = arith.constant dense<0.000000e+00> : vector<16xf32>
    %17 = vector.multi_reduction <add>, %16, %cst_6 [1] : vector<16x32xf32> to vector<16xf32>
    %18 = vector.shape_cast %17 : vector<16xf32> to vector<16x1xf32>
    %c1_i32 = arith.constant 1 : i32
    %19 = arith.muli %arg0, %c1_i32 : i32
    %20 = arith.addi %19, %arg1 : i32
    %c16_i32 = arith.constant 16 : i32
    %21 = arith.muli %20, %c16_i32 : i32
    %22 = tpu.iota {dimensions = array<i32: 0>} : vector<16x1xi32>
    %23 = vector.broadcast %21 : i32 to vector<16x1xi32>
    %24 = arith.addi %23, %22 : vector<16x1xi32>
    %c0_i32_7 = arith.constant 0 : i32
    %25 = vector.broadcast %c0_i32_7 : i32 to vector<16x1xi32>
    %26 = arith.cmpi ne, %4, %25 : vector<16x1xi32>
    %c16_i32_8 = arith.constant 16 : i32
    %27 = vector.broadcast %c16_i32_8 : i32 to vector<16x1xi32>
    %28 = arith.cmpi slt, %24, %27 : vector<16x1xi32>
    %29 = arith.andi %26, %28 : vector<16x1xi1>
    %30 = math.log %11 : vector<16x1xf32>
    %31 = arith.subf %30, %18 : vector<16x1xf32>
    %cst_9 = arith.constant 0.000000e+00 : f32
    %32 = vector.broadcast %cst_9 : f32 to vector<16x1xf32>
    %33 = arith.select %29, %31, %32 : vector<16x1xi1>, vector<16x1xf32>
    %c0_10 = arith.constant 0 : index
    %c0_11 = arith.constant 0 : index
    %34 = vector.load %arg5[%c0_10, %c0_11] : memref<16x1xf32, #tpu.memory_space<vmem>>, vector<16x1xf32>
    %35 = arith.addf %34, %33 : vector<16x1xf32>
    %c0_12 = arith.constant 0 : index
    %c0_13 = arith.constant 0 : index
    %36 = vector.load %arg5[%c0_12, %c0_13] : memref<16x1xf32, #tpu.memory_space<vmem>>, vector<16x1xf32>
    tpu.vector_store %arg5[%c0_12, %c0_13], %35 {strides = array<i32>} : memref<16x1xf32, #tpu.memory_space<vmem>>, vector<16x1xf32>,
    %c0_14 = arith.constant 0 : index
    %c0_15 = arith.constant 0 : index
    %37 = vector.load %arg6[%c0_14, %c0_15] : memref<16x1xf32, #tpu.memory_space<vmem>>, vector<16x1xf32>
    %38 = arith.extui %29 : vector<16x1xi1> to vector<16x1xi32>
    %39 = arith.sitofp %38 : vector<16x1xi32> to vector<16x1xf32>
    %40 = arith.addf %37, %39 : vector<16x1xf32>
    %c0_16 = arith.constant 0 : index
    %c0_17 = arith.constant 0 : index
    %41 = vector.load %arg6[%c0_16, %c0_17] : memref<16x1xf32, #tpu.memory_space<vmem>>, vector<16x1xf32>
    tpu.vector_store %arg6[%c0_16, %c0_17], %40 {strides = array<i32>} : memref<16x1xf32, #tpu.memory_space<vmem>>, vector<16x1xf32>,
    %c0_i32_18 = arith.constant 0 : i32
    %42 = arith.cmpi eq, %arg1, %c0_i32_18 : i32
    %43 = arith.extui %42 : i1 to i32
    %c0_i32_19 = arith.constant 0 : i32
    %44 = arith.cmpi ne, %43, %c0_i32_19 : i32
    scf.if %44 {
      %c0_20 = arith.constant 0 : index
      %c0_21 = arith.constant 0 : index
      %45 = vector.load %arg5[%c0_20, %c0_21] : memref<16x1xf32, #tpu.memory_space<vmem>>, vector<16x1xf32>
      %46 = vector.shape_cast %45 : vector<16x1xf32> to vector<1x16x1xf32>
      %cst_22 = arith.constant dense<0.000000e+00> : vector<1xf32>
      %47 = vector.multi_reduction <add>, %46, %cst_22 [1, 2] : vector<1x16x1xf32> to vector<1xf32>
      %48 = vector.shape_cast %47 : vector<1xf32> to vector<1x1x1xf32>
      %49 = vector.extract %48[0, 0, 0] : f32 from vector<1x1x1xf32>
      %c0_23 = arith.constant 0 : index
      %c0_24 = arith.constant 0 : index
      %50 = memref.load %arg4[%c0_23, %c0_24] : memref<1x2xf32, #tpu.memory_space<smem>>
      memref.store %49, %arg4[%c0_23, %c0_24] : memref<1x2xf32, #tpu.memory_space<smem>>
      %c0_25 = arith.constant 0 : index
      %c0_26 = arith.constant 0 : index
      %51 = vector.load %arg6[%c0_25, %c0_26] : memref<16x1xf32, #tpu.memory_space<vmem>>, vector<16x1xf32>
      %52 = vector.shape_cast %51 : vector<16x1xf32> to vector<1x16x1xf32>
      %cst_27 = arith.constant dense<0.000000e+00> : vector<1xf32>
      %53 = vector.multi_reduction <add>, %52, %cst_27 [1, 2] : vector<1x16x1xf32> to vector<1xf32>
      %54 = vector.shape_cast %53 : vector<1xf32> to vector<1x1x1xf32>
      %55 = vector.extract %54[0, 0, 0] : f32 from vector<1x1x1xf32>
      %c0_28 = arith.constant 0 : index
      %c1 = arith.constant 1 : index
      %56 = memref.load %arg4[%c0_28, %c1] : memref<1x2xf32, #tpu.memory_space<smem>>
      memref.store %55, %arg4[%c0_28, %c1] : memref<1x2xf32, #tpu.memory_space<smem>>
    } else {
    }
    return
  }
  func.func @transform_0(%arg0: i32, %arg1: i32) -> (i32, i32) {
    %c1_i32 = arith.constant 1 : i32
    %0 = arith.muli %arg0, %c1_i32 : i32
    %1 = arith.addi %0, %arg1 : i32
    %c0_i32 = arith.constant 0 : i32
    %2 = arith.minsi %1, %c0_i32 : i32
    %c0_i32_0 = arith.constant 0 : i32
    %c0_i32_1 = arith.constant 0 : i32
    return %2, %c0_i32_0 : i32, i32
  }
  func.func @transform_1(%arg0: i32, %arg1: i32) -> (i32, i32) {
    %c1_i32 = arith.constant 1 : i32
    %0 = arith.muli %arg0, %c1_i32 : i32
    %1 = arith.addi %0, %arg1 : i32
    %c0_i32 = arith.constant 0 : i32
    %2 = arith.minsi %1, %c0_i32 : i32
    %c0_i32_0 = arith.constant 0 : i32
    %c0_i32_1 = arith.constant 0 : i32
    return %2, %c0_i32_0 : i32, i32
  }
  func.func @transform_2(%arg0: i32, %arg1: i32) -> (i32, i32) {
    %c0_i32 = arith.constant 0 : i32
    %c0_i32_0 = arith.constant 0 : i32
    return %arg0, %c0_i32 : i32, i32
  }
}

</mosaic_0001>

<llo_original>
// kernel: tpu_custom_call.1
$region0: #{tpu_custom_call.1}
  #allocation0 [shape = 'u32[]', space=smem, size = 0x4, offset = 0x4, fixed_abs, tag = 'smem constant byte address 0x4 - core index']
  #allocation1 [shape = 'u32[144,128]{1,0:T(1,128)}', space=vmem, size = 0x12000, scoped, tag = 'internal scratch']
  #allocation2 [shape = 'f32[16,1]{1,0:T(8,128)}', space=vmem, size = 0x2000, scoped, tag = 'scratch operand']
  #allocation3 [shape = 'f32[16,1]{1,0:T(8,128)}', space=vmem, size = 0x2000, scoped, tag = 'scratch operand']
  %s0 = inlined_call_operand.vmem [shape: s32[16,1], index: 0, kind: input, shape index: {}]
  %s1 = inlined_call_operand.vmem [shape: f32[16,32], index: 1, kind: input, shape index: {}]
  %s2 = inlined_call_operand.hbm [shape: f32[1,2], index: 2, kind: output, shape index: {}]
  %s3 = sld [smem:[#allocation0]]
  $region26: #{tpu_custom_call.1} parent=0
    _
  %s5 = ssub.s32 1, %s3
  %s6 = scalar_select 0, %s5, %s3
  $region1: #{tpu_custom_call.1} parent=0
    #allocation4 [shape = 'u8[512]{0}', space=smem, size = 0x200, scoped, tag = 'output window, operand 0, single buffered']
    #allocation5 [shape = 's32[1]{0}', space=sflag, size = 0x4, scoped, tag = 'scoped memory for tpu_custom_call.1']
    %7 = vsyncpa [#allocation5], 0
    // Predicated region
    $region2: #{tpu_custom_call.1} parent=1 // pred_check
      _
    $region3: #{tpu_custom_call.1} parent=1 // pred_check_branch
      %9 = sbr.rel (0) target = $region5
    $region4: #{tpu_custom_call.1} parent=1 // pred_region
      %s10 = sadd.s32 0, 0
      %p11 = scmp.lt.s32.totalorder %s10, 0
      %s12 = scalar_select %p11, %s10, 0
      %s13 = smul.u32 2, %s12
      %p14 = scmp.lt.s32.totalorder %s13, 1
      %s15 = scalar_select %p14, %s13, 1
      %s16 = smul.addr %s15, 8
      %s17 = scalar_lea.vmem %s0, %s16
      %s18 = sadd.s32 0, 0
      %p19 = scmp.lt.s32.totalorder %s18, 0
      %s20 = scalar_select %p19, %s18, 0
      %s21 = smul.u32 2, %s20
    $region5: #{tpu_custom_call.1} parent=1 // pred_fallthru
      _
    // Predicated region
    $region6: #{tpu_custom_call.1} parent=1 // pred_check
      _
    $region7: #{tpu_custom_call.1} parent=1 // pred_check_branch
      %23 = sbr.rel (0) target = $region9
    $region8: #{tpu_custom_call.1} parent=1 // pred_region
      %s24 = sadd.s32 0, 0
      %p25 = scmp.lt.s32.totalorder %s24, 0
      %s26 = scalar_select %p25, %s24, 0
      %s27 = smul.u32 2, %s26
      %p28 = scmp.lt.s32.totalorder %s27, 1
      %s29 = scalar_select %p28, %s27, 1
      %s30 = smul.addr %s29, 8
      %s31 = scalar_lea.vmem %s1, %s30
      %s32 = sadd.s32 0, 0
      %p33 = scmp.lt.s32.totalorder %s32, 0
      %s34 = scalar_select %p33, %s32, 0
      %s35 = smul.u32 2, %s34
    $region9: #{tpu_custom_call.1} parent=1 // pred_fallthru
      _
    %s36 = sadd.s32 0, 0
    %p37 = scmp.lt.s32.totalorder %s36, 0
    %s38 = scalar_select %p37, %s36, 0
    %s39 = smul.u32 2, %s38
    %p40 = scmp.lt.s32.totalorder %s39, 1
    %s41 = scalar_select %p40, %s39, 1
    %s42 = smul.addr %s41, 8
    %s43 = scalar_lea.vmem %s0, %s42
    %s44 = sadd.s32 0, 0
    %p45 = scmp.lt.s32.totalorder %s44, 0
    %s46 = scalar_select %p45, %s44, 0
    %s47 = smul.u32 2, %s46
    %p48 = scmp.lt.s32.totalorder %s47, 1
    %s49 = scalar_select %p48, %s47, 1
    %s50 = smul.addr %s49, 8
    %s51 = scalar_lea.vmem %s1, %s50
    %s52 = sadd.s32 0, 0
    %p53 = scmp.lt.s32.totalorder %s52, 0
    %s54 = scalar_select %p53, %s52, 0
    %s55 = smul.u32 2, %s54
    %p56 = scmp.lt.s32.totalorder %s55, 1
    %s57 = scalar_select %p56, %s55, 1
    %s58 = smul.addr %s57, 8
    %s59 = scalar_lea.vmem %s0, %s58
    %s60 = sadd.s32 0, 0
    %p61 = scmp.lt.s32.totalorder %s60, 0
    %s62 = scalar_select %p61, %s60, 0
    %s63 = smul.u32 2, %s62
    %s64 = sadd.s32 0, 0
    %p65 = scmp.lt.s32.totalorder %s64, 0
    %s66 = scalar_select %p65, %s64, 0
    %s67 = smul.u32 2, %s66
    %p68 = scmp.lt.s32.totalorder %s67, 1
    %s69 = scalar_select %p68, %s67, 1
    %s70 = smul.addr %s69, 8
    %s71 = scalar_lea.vmem %s1, %s70
    %s72 = sadd.s32 0, 0
    %p73 = scmp.lt.s32.totalorder %s72, 0
    %s74 = scalar_select %p73, %s72, 0
    %s75 = smul.u32 2, %s74
    %p76 = scmp.eq.s32.totalorder 0, 0
    // Predicated region
    $region10: #{tpu_custom_call.1} parent=1 // pred_check
      %p77 = pneg %p76
    $region11: #{tpu_custom_call.1} parent=1 // pred_check_branch
      %79 = sbr.rel (%p77) target = $region13
    $region12: #{tpu_custom_call.1} parent=1 // pred_region
      %vm80 = vcmask 7168
      %81 = vst.msk [vmem:[#allocation2] sm:$0xff] %vm80, 0.0
      %82 = vst.msk [vmem:[#allocation2 + $0x8] sm:$0xff] %vm80, 0.0
      %83 = vst.msk [vmem:[#allocation3] sm:$0xff] %vm80, 0.0
      %84 = vst.msk [vmem:[#allocation3 + $0x8] sm:$0xff] %vm80, 0.0
    $region13: #{tpu_custom_call.1} parent=1 // pred_fallthru
      _
    %v85 = vld [vmem:[%s71] sm:$0xff]
    %v86 = vld [vmem:[%s71 + $0x8] sm:$0xff]
    %v87 = vld [vmem:[%s59] sm:$0xff]
    %v88 = vld [vmem:[%s59 + $0x8] sm:$0xff]
    %vm89 = vcmask 261120
    %v90 = vsel %vm89, %v85, -inf
    %91 = vmax.xlane.f32.xlu0 %v90
    %v92 = vpop.xlane.xlu0 %91
    %v93 = vsel %vm89, %v86, -inf
    %94 = vmax.xlane.f32.xlu0 %v93
    %v95 = vpop.xlane.xlu0 %94
    %v96 = vsub.f32 %v85, %v92
    %v97 = vsub.f32 %v86, %v95
    %v98 = vmul.f32 %v96, 1.442695
    %v99 = vpow.pop %v98
    %v100 = vmul.f32 %v97, 1.442695
    %v101 = vpow.pop %v100
    %v102 = vsel %vm89, %v99, 0.0
    %103 = vadd.xlane.f32.xlu0 %v102
    %v104 = vpop.xlane.xlu0 %103
    %v105 = vsel %vm89, %v101, 0.0
    %106 = vadd.xlane.f32.xlu0 %v105
    %v107 = vpop.xlane.xlu0 %106
    %v108 = vlaneseq
    %v109 = vand.u32 %v108, 127
    %110 = vset.pattern.permute.xlu0 0
    %111 = vperm.xlu0 %110, %v87
    %v112 = vpop.permute.xlu0 %111
    %113 = vset.pattern.permute.xlu0 0
    %114 = vperm.xlu0 %113, %v88
    %v115 = vpop.permute.xlu0 %114
    %vm116 = vcmp.eq.s32.totalorder %v109, %v112
    %vm117 = vcmp.eq.s32.totalorder %v109, %v115
    %v118 = vsel %vm116, %v96, 0.0
    %v119 = vsel %vm117, %v97, 0.0
    %v120 = vsel %vm89, %v118, 0.0
    %121 = vadd.xlane.f32.xlu0 %v120
    %v122 = vpop.xlane.xlu0 %121
    %v123 = vsel %vm89, %v119, 0.0
    %124 = vadd.xlane.f32.xlu0 %v123
    %v125 = vpop.xlane.xlu0 %124
    %s126 = sadd.s32 0, 0
    %s127 = smul.u32 %s126, 16
    %v128 = vlaneseq
    %v129 = vshrl.u32 %v128, 7
    %v130 = vadd.s32 %v129, 8
    %v131 = vstv %s127
    %v132 = vadd.s32 %v131, %v129
    %v133 = vadd.s32 %v131, %v130
    %vm134 = vcmp.ne.s32.totalorder %v87, 0
    %vm135 = vcmp.ne.s32.totalorder %v88, 0
    %vm136 = vcmp.lt.s32.totalorder %v132, 16
    %vm137 = vcmp.lt.s32.totalorder %v133, 16
    %vm138 = vmand %vm134, %vm136
    %vm139 = vmand %vm135, %vm137
    %v140 = vlog2.pop %v104
    %v141 = vmul.f32 %v140, 0.6931472
    %v142 = vlog2.pop %v107
    %v143 = vmul.f32 %v142, 0.6931472
    %v144 = vsub.f32 %v141, %v122
    %v145 = vsub.f32 %v143, %v125
    %v146 = vsel %vm138, %v144, 0.0
    %v147 = vsel %vm139, %v145, 0.0
    %v148 = vld [vmem:[#allocation2] sm:$0xff]
    %v149 = vld [vmem:[#allocation2 + $0x8] sm:$0xff]
    %v150 = vadd.f32 %v148, %v146
    %v151 = vadd.f32 %v149, %v147
    %vm152 = vcmask 7168
    %153 = vst.msk [vmem:[#allocation2] sm:$0xff] %vm152, %v150
    %154 = vst.msk [vmem:[#allocation2 + $0x8] sm:$0xff] %vm152, %v151
    %v155 = vld [vmem:[#allocation3] sm:$0xff]
    %v156 = vld [vmem:[#allocation3 + $0x8] sm:$0xff]
    %v157 = vsel %vm138, 1, 0
    %v158 = vsel %vm139, 1, 0
    %v159 = vcvt.s32.f32 %v157
    %v160 = vcvt.s32.f32 %v158
    %v161 = vadd.f32 %v155, %v159
    %v162 = vadd.f32 %v156, %v160
    %163 = vst.msk [vmem:[#allocation3] sm:$0xff] %vm152, %v161
    %164 = vst.msk [vmem:[#allocation3 + $0x8] sm:$0xff] %vm152, %v162
    // Predicated region
    $region14: #{tpu_custom_call.1} parent=1 // pred_check
      %p165 = pneg %p76
    $region15: #{tpu_custom_call.1} parent=1 // pred_check_branch
      %167 = sbr.rel (%p165) target = $region17
    $region16: #{tpu_custom_call.1} parent=1 // pred_region
      %v168 = vld [vmem:[#allocation2] sm:$0xff]
      %v169 = vld [vmem:[#allocation2 + $0x8] sm:$0xff]
      %v170 = vsel %vm152, %v168, 0.0
      %v171 = vsel %vm152, %v169, 0.0
      %v172 = vadd.f32 %v170, %v171
      %173 = vadd.xlane.f32.xlu0 %v172
      %v174 = vpop.xlane.xlu0 %173
      %v175 = vrot.slane %v174, 4
      %v176 = vadd.f32 %v174, %v175
      %v177 = vrot.slane %v176, 2
      %v178 = vadd.f32 %v176, %v177
      %v179 = vrot.slane %v178, 1
      %v180 = vadd.f32 %v178, %v179
      %s181 = vtos %v180
      %s182 = scalar_lea.smem [#allocation4], 0
      %183 = sst [smem:[%s182]] %s181
      %v184 = vld [vmem:[#allocation3] sm:$0xff]
      %v185 = vld [vmem:[#allocation3 + $0x8] sm:$0xff]
      %v186 = vsel %vm152, %v184, 0.0
      %v187 = vsel %vm152, %v185, 0.0
      %v188 = vadd.f32 %v186, %v187
      %189 = vadd.xlane.f32.xlu0 %v188
      %v190 = vpop.xlane.xlu0 %189
      %v191 = vrot.slane %v190, 4
      %v192 = vadd.f32 %v190, %v191
      %v193 = vrot.slane %v192, 2
      %v194 = vadd.f32 %v192, %v193
      %v195 = vrot.slane %v194, 1
      %v196 = vadd.f32 %v194, %v195
      %s197 = vtos %v196
      %s198 = scalar_lea.smem [#allocation4], 1
      %199 = sst [smem:[%s198]] %s197
    $region17: #{tpu_custom_call.1} parent=1 // pred_fallthru
      _
    // Predicated region
    $region18: #{tpu_custom_call.1} parent=1 // pred_check
      _
    $region19: #{tpu_custom_call.1} parent=1 // pred_check_branch
      %201 = sbr.rel (0) target = $region21
    $region20: #{tpu_custom_call.1} parent=1 // pred_region
      %s203 = ssub.s32 16, 16
      %204 = vsyncadd [#allocation5], %s203
      %207 = dma.smem_to_hbm [#allocation4], 16, %s2, [#allocation5]
    $region21: #{tpu_custom_call.1} parent=1 // pred_fallthru
      _
    // Predicated region
    $region22: #{tpu_custom_call.1} parent=1 // pred_check
      _
    $region23: #{tpu_custom_call.1} parent=1 // pred_check_branch
      %209 = sbr.rel (0) target = $region25
    $region24: #{tpu_custom_call.1} parent=1 // pred_region
      %210 = dma.done [#allocation5], 16
    $region25: #{tpu_custom_call.1} parent=1 // pred_fallthru
      _
    %211 = sfence
    %212 = vsyncpa [#allocation5], 1

</llo_original>
